<compile_context>
chip_gen: v7x
topology: tpu7x:2x2x1
jax: 0.10.0
libtpu: 0.0.40
codegen_flags: <defaults>
</compile_context>

<pallas_src>
import math
import functools

import jax
import jax.numpy as jnp
from jax import lax
from jax.experimental import pallas as pl
from jax.experimental.pallas import tpu as pltpu


# ----------------------------- helpers -----------------------------

def _layer_norm(h, g, b, eps=1e-5):
    mu = jnp.mean(h, axis=-1, keepdims=True)
    var = jnp.mean(jnp.square(h - mu), axis=-1, keepdims=True)
    return (h - mu) * lax.rsqrt(var + eps) * g + b


def _gelu_exact(x):
    # nn.GELU() default = exact (erf-based) formulation.
    return 0.5 * x * (1.0 + lax.erf(x * (1.0 / math.sqrt(2.0))))


def _pick_sublane_tile(n, target):
    """Largest multiple-of-8 divisor of n that is <= target (else the full dim)."""
    if n <= target:
        return n
    for t in range(target, 7, -1):
        if n % t == 0 and t % 8 == 0:
            return t
    return n


def _pick_lane_tile(n, target):
    """Largest multiple-of-128 divisor of n that is <= target (else the full dim)."""
    if n <= target:
        return n
    for t in range(target, 127, -1):
        if n % t == 0 and t % 128 == 0:
            return t
    return n


def _vmem_limit_bytes():
    # Size the scoped VMEM limit per TPU generation (64 MiB v7x vs 128 MiB v5e/v6e).
    cap = 64 * 1024 * 1024
    try:
        cap = int(pltpu.get_tpu_info().vmem_capacity_bytes)
    except Exception:
        pass
    return int(cap * 3 // 4)


def _weight_spec(arr, single_buffer):
    # Grid-invariant weight block; optionally single-buffered (fetched once anyway).
    idx = lambda *_: (0,) * arr.ndim
    if single_buffer:
        return pl.BlockSpec(arr.shape, idx, pipeline_mode=pl.Buffered(1))
    return pl.BlockSpec(arr.shape, idx)


# ----------------------------- kernels -----------------------------

def _ln_qkv_kernel(x_ref, g_ref, b_ref, w_ref, bias_ref, qkv_ref):
    # LN1 (f32) + single lane-dense (TR,E)x(E,3E) bf16 matmul, f32 accumulate.
    h = _layer_norm(x_ref[...], g_ref[...], b_ref[...])
    acc = jnp.dot(h.astype(jnp.bfloat16), w_ref[...],
                  preferred_element_type=jnp.float32) + bias_ref[...]
    qkv_ref[...] = acc.astype(qkv_ref.dtype)


def _flash_attn_kernel(q_ref, k_ref, v_ref, y_ref, m_s, l_s, acc_s, *, tq, tk):
    qi = pl.program_id(1)
    ki = pl.program_id(2)

    @pl.when(ki == 0)
    def _init():
        m_s[...] = jnp.full(m_s.shape, -jnp.inf, jnp.float32)
        l_s[...] = jnp.zeros(l_s.shape, jnp.float32)
        acc_s[...] = jnp.zeros(acc_s.shape, jnp.float32)

    # Skip key tiles that lie entirely above the causal diagonal.
    @pl.when(ki * tk <= qi * tq + (tq - 1))
    def _update():
        # q already carries the 1/sqrt(hs) scale (folded into the weights host-side).
        s = jnp.einsum('hqd,hkd->hqk', q_ref[...], k_ref[...],
                       preferred_element_type=jnp.float32)            # (H, TQ, TK) f32
        # 2-D mask, broadcast over the head axis (no (H,S,S) iota scratch).
        row = qi * tq + lax.broadcasted_iota(jnp.int32, (tq, tk), 0)
        col = ki * tk + lax.broadcasted_iota(jnp.int32, (tq, tk), 1)
        s = jnp.where((row >= col)[None], s, -jnp.inf)

        m_new = jnp.maximum(m_s[...], s.max(axis=-1, keepdims=True))
        alpha = jnp.exp(m_s[...] - m_new)
        p = jnp.exp(s - m_new)
        l_s[...] = alpha * l_s[...] + p.sum(axis=-1, keepdims=True)
        acc_s[...] = alpha * acc_s[...] + jnp.einsum(
            'hqk,hkd->hqd', p.astype(jnp.bfloat16), v_ref[...],
            preferred_element_type=jnp.float32)
        m_s[...] = m_new

    @pl.when(ki == pl.num_programs(2) - 1)
    def _finalize():
        # Normalize once after the key loop; reciprocal goes to the EUP slot.
        y_ref[...] = (acc_s[...] *
                      pl.reciprocal(l_s[...], approx=True)).astype(y_ref.dtype)


def _proj_mlp_kernel(x_ref, y_ref, w_ao_ref, b_ao_ref, g2_ref, b2_ref,
                     w_fc_ref, b_fc_ref, w_mp_ref, b_mp_ref, out_ref,
                     x1_s, h2_s, acc_s):
    c = pl.program_id(2)

    @pl.when(c == 0)
    def _init():
        # Attention output projection as ONE K=E matmul + first residual.
        attn = jnp.dot(y_ref[...], w_ao_ref[...],
                       preferred_element_type=jnp.float32) + b_ao_ref[...]
        x1 = x_ref[...] + attn
        x1_s[...] = x1
        h2_s[...] = _layer_norm(x1, g2_ref[...], b2_ref[...]).astype(jnp.bfloat16)
        acc_s[...] = jnp.zeros(acc_s.shape, jnp.float32)

    # MLP, K-tiled over the 4E hidden dim (GELU is elementwise -> exact per chunk).
    ff = jnp.dot(h2_s[...], w_fc_ref[...],
                 preferred_element_type=jnp.float32) + b_fc_ref[...]
    ff = _gelu_exact(ff)
    acc_s[...] += jnp.dot(ff.astype(jnp.bfloat16), w_mp_ref[...],
                          preferred_element_type=jnp.float32)

    @pl.when(c == pl.num_programs(2) - 1)
    def _finalize():
        out_ref[...] = (x1_s[...] + acc_s[...] + b_mp_ref[...]).astype(out_ref.dtype)


# ----------------------------- wrapper -----------------------------

def transformer_block(x, params, n_head, *, single_buffer_weights=True):
    (ln1_g, ln1_b, w_attn, b_attn, w_aproj, b_aproj,
     ln2_g, ln2_b, w_fc, b_fc, w_mproj, b_mproj) = params
    B, S, E = x.shape
    H = n_head
    hs = E // H
    F4 = 4 * E

    # ---- host-side weight prep (one-time dtype / scale plumbing) ----
    scale = 1.0 / math.sqrt(hs)
    col_scale = jnp.concatenate([jnp.full((E,), scale, jnp.float32),
                                 jnp.ones((2 * E,), jnp.float32)])
    w_qkv = (w_attn * col_scale[None, :]).astype(jnp.bfloat16)    # (E, 3E), q pre-scaled
    b_qkv = (b_attn * col_scale[None, :]).astype(jnp.float32)     # (1, 3E)
    w_ao = w_aproj.astype(jnp.bfloat16)                           # (E, E) rows head-major
    w_fc_b = w_fc.astype(jnp.bfloat16)                            # (E, 4E)
    w_mp_b = w_mproj.astype(jnp.bfloat16)                         # (4E, E)

    # ---- tile sizes (multiples of 8 / 128, divisors of the dims, or full) ----
    TR = _pick_sublane_tile(S, 256)      # row tile for projection / MLP kernels
    TQ = _pick_sublane_tile(S, 128)      # flash query tile
    TK = _pick_sublane_tile(S, 128)      # flash key tile
    TC = _pick_lane_tile(F4, 512)        # MLP hidden reduction tile

    wspec = functools.partial(_weight_spec, single_buffer=single_buffer_weights)

    def cparams(sem):
        return pltpu.CompilerParams(dimension_semantics=sem,
                                    vmem_limit_bytes=_vmem_limit_bytes())

    # ---- kernel 1: LN1 + fused QKV projection ----
    qkv = pl.pallas_call(
        _ln_qkv_kernel,
        out_shape=jax.ShapeDtypeStruct((B, S, 3 * E), jnp.bfloat16),
        grid=(B, S // TR),
        in_specs=[pl.BlockSpec((None, TR, E), lambda b, r: (b, r, 0)),
                  wspec(ln1_g), wspec(ln1_b), wspec(w_qkv), wspec(b_qkv)],
        out_specs=pl.BlockSpec((None, TR, 3 * E), lambda b, r: (b, r, 0)),
        compiler_params=cparams(("parallel", "parallel")),
    )(x, ln1_g, ln1_b, w_qkv, b_qkv)

    # Layout plumbing in plain XLA (keeps the kernels free of lane shuffles):
    q, k, v = jnp.split(qkv, 3, axis=-1)

    def to_heads(t):
        return t.reshape(B, S, H, hs).transpose(0, 2, 1, 3)       # (B, H, S, hs)

    q, k, v = to_heads(q), to_heads(k), to_heads(v)

    # ---- kernel 2: flash (online-softmax) causal attention ----
    y = pl.pallas_call(
        functools.partial(_flash_attn_kernel, tq=TQ, tk=TK),
        out_shape=jax.ShapeDtypeStruct((B, H, S, hs), jnp.bfloat16),
        grid=(B, S // TQ, S // TK),
        in_specs=[pl.BlockSpec((None, H, TQ, hs), lambda b, qi, ki: (b, 0, qi, 0)),
                  pl.BlockSpec((None, H, TK, hs), lambda b, qi, ki: (b, 0, ki, 0)),
                  pl.BlockSpec((None, H, TK, hs), lambda b, qi, ki: (b, 0, ki, 0))],
        out_specs=pl.BlockSpec((None, H, TQ, hs), lambda b, qi, ki: (b, 0, qi, 0)),
        scratch_shapes=[pltpu.VMEM((H, TQ, 1), jnp.float32),   # running max
                        pltpu.VMEM((H, TQ, 1), jnp.float32),   # running denom
                        pltpu.VMEM((H, TQ, hs), jnp.float32)], # output accumulator
        compiler_params=cparams(("parallel", "parallel", "arbitrary")),
    )(q, k, v)

    # (B, H, S, hs) -> (B, S, E) head-major columns (matches c_proj's input layout).
    y2 = y.transpose(0, 2, 1, 3).reshape(B, S, E)

    # ---- kernel 3: out-proj + residual + LN2 + K-tiled MLP + residual ----
    out = pl.pallas_call(
        _proj_mlp_kernel,
        out_shape=jax.ShapeDtypeStruct((B, S, E), x.dtype),
        grid=(B, S // TR, F4 // TC),
        in_specs=[pl.BlockSpec((None, TR, E), lambda b, r, c: (b, r, 0)),   # x (residual)
                  pl.BlockSpec((None, TR, E), lambda b, r, c: (b, r, 0)),   # attention y
                  wspec(w_ao), wspec(b_aproj), wspec(ln2_g), wspec(ln2_b),
                  pl.BlockSpec((E, TC), lambda b, r, c: (0, c)),            # w_fc chunk
                  pl.BlockSpec((1, TC), lambda b, r, c: (0, c)),            # b_fc chunk
                  pl.BlockSpec((TC, E), lambda b, r, c: (c, 0)),            # w_mproj chunk
                  wspec(b_mproj)],
        out_specs=pl.BlockSpec((None, TR, E), lambda b, r, c: (b, r, 0)),
        scratch_shapes=[pltpu.VMEM((TR, E), jnp.float32),      # x1 (first residual)
                        pltpu.VMEM((TR, E), jnp.bfloat16),     # ln2(x1)
                        pltpu.VMEM((TR, E), jnp.float32)],     # MLP accumulator
        compiler_params=cparams(("parallel", "parallel", "arbitrary")),
    )(x, y2, w_ao, b_aproj, ln2_g, ln2_b, w_fc_b, b_fc, w_mp_b, b_mproj)

    return out


# ------------------------- pure-JAX reference ---------------------------------

def transformer_block_ref(x, params, n_head):
    (ln1_g, ln1_b, w_attn, b_attn, w_aproj, b_aproj,
     ln2_g, ln2_b, w_fc, b_fc, w_mproj, b_mproj) = params
    B, S, E = x.shape
    hs = E // n_head

    def ln(h, g, b):
        mu = jnp.mean(h, axis=-1, keepdims=True)
        var = jnp.mean(jnp.square(h - mu), axis=-1, keepdims=True)
        return (h - mu) * jax.lax.rsqrt(var + 1e-5) * g + b

    h1 = ln(x, ln1_g, ln1_b)
    qkv = h1 @ w_attn + b_attn
    q, k, v = jnp.split(qkv, 3, axis=-1)
    q = q.reshape(B, S, n_head, hs).transpose(0, 2, 1, 3)
    k = k.reshape(B, S, n_head, hs).transpose(0, 2, 1, 3)
    v = v.reshape(B, S, n_head, hs).transpose(0, 2, 1, 3)
    att = jnp.einsum('bhqd,bhkd->bhqk', q, k,
                     precision=jax.lax.Precision.HIGHEST) / math.sqrt(hs)
    mask = jnp.tril(jnp.ones((S, S), bool))
    att = jnp.where(mask[None, None], att, -jnp.inf)
    att = jax.nn.softmax(att, axis=-1)
    y = jnp.einsum('bhqk,bhkd->bhqd', att, v,
                   precision=jax.lax.Precision.HIGHEST)
    y = y.transpose(0, 2, 1, 3).reshape(B, S, E)
    x1 = x + (y @ w_aproj + b_aproj)

    h2 = ln(x1, ln2_g, ln2_b)
    ff = jax.nn.gelu(h2 @ w_fc + b_fc, approximate=False)
    return x1 + (ff @ w_mproj + b_mproj)


# --------------------------------- main ----------------------------------------

if __name__ == "__main__":
    # small config consistent with the module: n_embd=32, n_head=4, seq=8
    B, S, E, H = 2, 8, 32, 4
    key = jax.random.PRNGKey(0)
    keys = jax.random.split(key, 16)

    x = jax.random.normal(keys[0], (B, S, E), jnp.float32)

    def w(k, shape, scale=0.02):
        return scale * jax.random.normal(k, shape, jnp.float32)

    # PyTorch Linear computes x @ W.T + b; we store the already-transposed (in, out) matrices.
    params = (
        jnp.ones((1, E), jnp.float32),          # ln_1.weight
        jnp.zeros((1, E), jnp.float32),         # ln_1.bias
        w(keys[1], (E, 3 * E)),                 # attn.c_attn.weight (transposed)
        w(keys[2], (1, 3 * E)),                 # attn.c_attn.bias
        w(keys[3], (E, E)),                     # attn.c_proj.weight (transposed)
        w(keys[4], (1, E)),                     # attn.c_proj.bias
        jnp.ones((1, E), jnp.float32),          # ln_2.weight
        jnp.zeros((1, E), jnp.float32),         # ln_2.bias
        w(keys[5], (E, 4 * E)),                 # mlp.c_fc.weight (transposed)
        w(keys[6], (1, 4 * E)),                 # mlp.c_fc.bias
        w(keys[7], (4 * E, E)),                 # mlp.c_proj.weight (transposed)
        w(keys[8], (1, E)),                     # mlp.c_proj.bias
    )

    def run(single_buffer):
        return jax.block_until_ready(
            transformer_block(x, params, H, single_buffer_weights=single_buffer))

    try:
        out = run(True)
    except Exception:
        # If this jax build rejects pipeline_mode=pl.Buffered(1), fall back to the
        # default (double-buffered) weight blocks; correctness is unchanged.
        out = run(False)

    ref = transformer_block_ref(x, params, H)
    assert out.shape == (B, S, E)
    err = jnp.max(jnp.abs(out - ref))
    assert jnp.allclose(out, ref, atol=5e-3, rtol=5e-3), f"max abs err = {err}"

    print("KERNEL_OK")
</pallas_src>

<mosaic_0001>
module attributes {stable_mosaic.version = 11 : i64} {
  func.func @_ln_qkv_kernel(%arg0: i32, %arg1: i32, %arg2: memref<1x8x32xf32, #tpu.memory_space<vmem>>, %arg3: memref<1x32xf32, #tpu.memory_space<vmem>>, %arg4: memref<1x32xf32, #tpu.memory_space<vmem>>, %arg5: memref<32x96xbf16, #tpu.memory_space<vmem>>, %arg6: memref<1x96xf32, #tpu.memory_space<vmem>>, %arg7: memref<1x8x96xbf16, #tpu.memory_space<vmem>>) attributes {dimension_semantics = [#tpu.dimension_semantics<parallel>, #tpu.dimension_semantics<parallel>], iteration_bounds = array<i64: 2, 1>, scalar_prefetch = 0 : i64, scratch_operands = 0 : i64, tpu.core_type = #tpu.core_type<tc>, window_params = [{transform_indices = @transform_0, window_bounds = array<i64: 1, 8, 32>}, {pipeline_mode = #tpu.pipeline_mode<synchronous>, transform_indices = @transform_1, window_bounds = array<i64: 1, 32>}, {pipeline_mode = #tpu.pipeline_mode<synchronous>, transform_indices = @transform_2, window_bounds = array<i64: 1, 32>}, {pipeline_mode = #tpu.pipeline_mode<synchronous>, transform_indices = @transform_3, window_bounds = array<i64: 32, 96>}, {pipeline_mode = #tpu.pipeline_mode<synchronous>, transform_indices = @transform_4, window_bounds = array<i64: 1, 96>}, {transform_indices = @transform_5, window_bounds = array<i64: 1, 8, 96>}]} {
    %c0 = arith.constant 0 : index
    %c0_0 = arith.constant 0 : index
    %c0_1 = arith.constant 0 : index
    %0 = vector.load %arg2[%c0, %c0_0, %c0_1] : memref<1x8x32xf32, #tpu.memory_space<vmem>>, vector<1x8x32xf32>
    %1 = vector.shape_cast %0 : vector<1x8x32xf32> to vector<8x32xf32>
    %c0_2 = arith.constant 0 : index
    %c0_3 = arith.constant 0 : index
    %2 = vector.load %arg3[%c0_2, %c0_3] : memref<1x32xf32, #tpu.memory_space<vmem>>, vector<1x32xf32>
    %c0_4 = arith.constant 0 : index
    %c0_5 = arith.constant 0 : index
    %3 = vector.load %arg4[%c0_4, %c0_5] : memref<1x32xf32, #tpu.memory_space<vmem>>, vector<1x32xf32>
    %cst = arith.constant dense<0.000000e+00> : vector<8xf32>
    %4 = vector.multi_reduction <add>, %1, %cst [1] : vector<8x32xf32> to vector<8xf32>
    %5 = vector.shape_cast %4 : vector<8xf32> to vector<8x1xf32>
    %cst_6 = arith.constant 3.200000e+01 : f32
    %6 = vector.broadcast %cst_6 : f32 to vector<8x1xf32>
    %7 = arith.divf %5, %6 : vector<8x1xf32>
    %8 = vector.broadcast %7 : vector<8x1xf32> to vector<8x32xf32>
    %9 = arith.subf %1, %8 : vector<8x32xf32>
    %10 = arith.mulf %9, %9 : vector<8x32xf32>
    %cst_7 = arith.constant dense<0.000000e+00> : vector<8xf32>
    %11 = vector.multi_reduction <add>, %10, %cst_7 [1] : vector<8x32xf32> to vector<8xf32>
    %12 = vector.shape_cast %11 : vector<8xf32> to vector<8x1xf32>
    %cst_8 = arith.constant 3.200000e+01 : f32
    %13 = vector.broadcast %cst_8 : f32 to vector<8x1xf32>
    %14 = arith.divf %12, %13 : vector<8x1xf32>
    %15 = vector.broadcast %7 : vector<8x1xf32> to vector<8x32xf32>
    %16 = arith.subf %1, %15 : vector<8x32xf32>
    %cst_9 = arith.constant 9.99999974E-6 : f32
    %17 = vector.broadcast %cst_9 : f32 to vector<8x1xf32>
    %18 = arith.addf %14, %17 : vector<8x1xf32>
    %19 = math.rsqrt %18 : vector<8x1xf32>
    %20 = vector.broadcast %19 : vector<8x1xf32> to vector<8x32xf32>
    %21 = arith.mulf %16, %20 : vector<8x32xf32>
    %22 = vector.broadcast %2 : vector<1x32xf32> to vector<8x32xf32>
    %23 = arith.mulf %21, %22 : vector<8x32xf32>
    %24 = vector.broadcast %3 : vector<1x32xf32> to vector<8x32xf32>
    %25 = arith.addf %23, %24 : vector<8x32xf32>
    %26 = arith.truncf %25 : vector<8x32xf32> to vector<8x32xbf16>
    %c0_10 = arith.constant 0 : index
    %c0_11 = arith.constant 0 : index
    %27 = vector.load %arg5[%c0_10, %c0_11] : memref<32x96xbf16, #tpu.memory_space<vmem>>, vector<32x96xbf16>
    %cst_12 = arith.constant dense<0.000000e+00> : vector<8x96xf32>
    %28 = tpu.matmul %26, %27, %cst_12 {dimension_numbers = #tpu.dot_dimension_numbers<[1], [0], [0], [1], [0, 0, 1, 1], [], []>} : vector<8x32xbf16>, vector<32x96xbf16>, vector<8x96xf32> -> vector<8x96xf32>
    %c0_13 = arith.constant 0 : index
    %c0_14 = arith.constant 0 : index
    %29 = vector.load %arg6[%c0_13, %c0_14] : memref<1x96xf32, #tpu.memory_space<vmem>>, vector<1x96xf32>
    %30 = vector.broadcast %29 : vector<1x96xf32> to vector<8x96xf32>
    %31 = arith.addf %28, %30 : vector<8x96xf32>
    %32 = arith.truncf %31 : vector<8x96xf32> to vector<8x96xbf16>
    %c0_15 = arith.constant 0 : index
    %c0_16 = arith.constant 0 : index
    %c0_17 = arith.constant 0 : index
    %33 = vector.load %arg7[%c0_15, %c0_16, %c0_17] : memref<1x8x96xbf16, #tpu.memory_space<vmem>>, vector<1x8x96xbf16>
    %34 = vector.shape_cast %33 : vector<1x8x96xbf16> to vector<8x96xbf16>
    %35 = vector.shape_cast %32 : vector<8x96xbf16> to vector<1x8x96xbf16>
    tpu.vector_store %arg7[%c0_15, %c0_16, %c0_17], %35 {strides = array<i32>} : memref<1x8x96xbf16, #tpu.memory_space<vmem>>, vector<1x8x96xbf16>,
    return
  }
  func.func @transform_0(%arg0: i32, %arg1: i32) -> (i32, i32, i32) {
    %c0_i32 = arith.constant 0 : i32
    %c0_i32_0 = arith.constant 0 : i32
    return %arg0, %arg1, %c0_i32 : i32, i32, i32
  }
  func.func @transform_1(%arg0: i32, %arg1: i32) -> (i32, i32) {
    %c0_i32 = arith.constant 0 : i32
    %c0_i32_0 = arith.constant 0 : i32
    %c0_i32_1 = arith.constant 0 : i32
    return %c0_i32, %c0_i32_0 : i32, i32
  }
  func.func @transform_2(%arg0: i32, %arg1: i32) -> (i32, i32) {
    %c0_i32 = arith.constant 0 : i32
    %c0_i32_0 = arith.constant 0 : i32
    %c0_i32_1 = arith.constant 0 : i32
    return %c0_i32, %c0_i32_0 : i32, i32
  }
  func.func @transform_3(%arg0: i32, %arg1: i32) -> (i32, i32) {
    %c0_i32 = arith.constant 0 : i32
    %c0_i32_0 = arith.constant 0 : i32
    %c0_i32_1 = arith.constant 0 : i32
    return %c0_i32, %c0_i32_0 : i32, i32
  }
  func.func @transform_4(%arg0: i32, %arg1: i32) -> (i32, i32) {
    %c0_i32 = arith.constant 0 : i32
    %c0_i32_0 = arith.constant 0 : i32
    %c0_i32_1 = arith.constant 0 : i32
    return %c0_i32, %c0_i32_0 : i32, i32
  }
  func.func @transform_5(%arg0: i32, %arg1: i32) -> (i32, i32, i32) {
    %c0_i32 = arith.constant 0 : i32
    %c0_i32_0 = arith.constant 0 : i32
    return %arg0, %arg1, %c0_i32 : i32, i32, i32
  }
}

module attributes {stable_mosaic.version = 11 : i64} {
  func.func @_ln_qkv_kernel(%arg0: i32, %arg1: i32, %arg2: memref<1x8x32xf32, #tpu.memory_space<vmem>>, %arg3: memref<1x32xf32, #tpu.memory_space<vmem>>, %arg4: memref<1x32xf32, #tpu.memory_space<vmem>>, %arg5: memref<32x96xbf16, #tpu.memory_space<vmem>>, %arg6: memref<1x96xf32, #tpu.memory_space<vmem>>, %arg7: memref<1x8x96xbf16, #tpu.memory_space<vmem>>) attributes {dimension_semantics = [#tpu.dimension_semantics<parallel>, #tpu.dimension_semantics<parallel>], iteration_bounds = array<i64: 2, 1>, scalar_prefetch = 0 : i64, scratch_operands = 0 : i64, tpu.core_type = #tpu.core_type<tc>, window_params = [{transform_indices = @transform_0, window_bounds = array<i64: 1, 8, 32>}, {pipeline_mode = #tpu.pipeline_mode<synchronous>, transform_indices = @transform_1, window_bounds = array<i64: 1, 32>}, {pipeline_mode = #tpu.pipeline_mode<synchronous>, transform_indices = @transform_2, window_bounds = array<i64: 1, 32>}, {pipeline_mode = #tpu.pipeline_mode<synchronous>, transform_indices = @transform_3, window_bounds = array<i64: 32, 96>}, {pipeline_mode = #tpu.pipeline_mode<synchronous>, transform_indices = @transform_4, window_bounds = array<i64: 1, 96>}, {transform_indices = @transform_5, window_bounds = array<i64: 1, 8, 96>}]} {
    %c0 = arith.constant 0 : index
    %c0_0 = arith.constant 0 : index
    %c0_1 = arith.constant 0 : index
    %0 = vector.load %arg2[%c0, %c0_0, %c0_1] : memref<1x8x32xf32, #tpu.memory_space<vmem>>, vector<1x8x32xf32>
    %1 = vector.shape_cast %0 : vector<1x8x32xf32> to vector<8x32xf32>
    %c0_2 = arith.constant 0 : index
    %c0_3 = arith.constant 0 : index
    %2 = vector.load %arg3[%c0_2, %c0_3] : memref<1x32xf32, #tpu.memory_space<vmem>>, vector<1x32xf32>
    %c0_4 = arith.constant 0 : index
    %c0_5 = arith.constant 0 : index
    %3 = vector.load %arg4[%c0_4, %c0_5] : memref<1x32xf32, #tpu.memory_space<vmem>>, vector<1x32xf32>
    %cst = arith.constant dense<0.000000e+00> : vector<8xf32>
    %4 = vector.multi_reduction <add>, %1, %cst [1] : vector<8x32xf32> to vector<8xf32>
    %5 = vector.shape_cast %4 : vector<8xf32> to vector<8x1xf32>
    %cst_6 = arith.constant 3.200000e+01 : f32
    %6 = vector.broadcast %cst_6 : f32 to vector<8x1xf32>
    %7 = arith.divf %5, %6 : vector<8x1xf32>
    %8 = vector.broadcast %7 : vector<8x1xf32> to vector<8x32xf32>
    %9 = arith.subf %1, %8 : vector<8x32xf32>
    %10 = arith.mulf %9, %9 : vector<8x32xf32>
    %cst_7 = arith.constant dense<0.000000e+00> : vector<8xf32>
    %11 = vector.multi_reduction <add>, %10, %cst_7 [1] : vector<8x32xf32> to vector<8xf32>
    %12 = vector.shape_cast %11 : vector<8xf32> to vector<8x1xf32>
    %cst_8 = arith.constant 3.200000e+01 : f32
    %13 = vector.broadcast %cst_8 : f32 to vector<8x1xf32>
    %14 = arith.divf %12, %13 : vector<8x1xf32>
    %15 = vector.broadcast %7 : vector<8x1xf32> to vector<8x32xf32>
    %16 = arith.subf %1, %15 : vector<8x32xf32>
    %cst_9 = arith.constant 9.99999974E-6 : f32
    %17 = vector.broadcast %cst_9 : f32 to vector<8x1xf32>
    %18 = arith.addf %14, %17 : vector<8x1xf32>
    %19 = math.rsqrt %18 : vector<8x1xf32>
    %20 = vector.broadcast %19 : vector<8x1xf32> to vector<8x32xf32>
    %21 = arith.mulf %16, %20 : vector<8x32xf32>
    %22 = vector.broadcast %2 : vector<1x32xf32> to vector<8x32xf32>
    %23 = arith.mulf %21, %22 : vector<8x32xf32>
    %24 = vector.broadcast %3 : vector<1x32xf32> to vector<8x32xf32>
    %25 = arith.addf %23, %24 : vector<8x32xf32>
    %26 = arith.truncf %25 : vector<8x32xf32> to vector<8x32xbf16>
    %c0_10 = arith.constant 0 : index
    %c0_11 = arith.constant 0 : index
    %27 = vector.load %arg5[%c0_10, %c0_11] : memref<32x96xbf16, #tpu.memory_space<vmem>>, vector<32x96xbf16>
    %cst_12 = arith.constant dense<0.000000e+00> : vector<8x96xf32>
    %28 = tpu.matmul %26, %27, %cst_12 {dimension_numbers = #tpu.dot_dimension_numbers<[1], [0], [0], [1], [0, 0, 1, 1], [], []>} : vector<8x32xbf16>, vector<32x96xbf16>, vector<8x96xf32> -> vector<8x96xf32>
    %c0_13 = arith.constant 0 : index
    %c0_14 = arith.constant 0 : index
    %29 = vector.load %arg6[%c0_13, %c0_14] : memref<1x96xf32, #tpu.memory_space<vmem>>, vector<1x96xf32>
    %30 = vector.broadcast %29 : vector<1x96xf32> to vector<8x96xf32>
    %31 = arith.addf %28, %30 : vector<8x96xf32>
    %32 = arith.truncf %31 : vector<8x96xf32> to vector<8x96xbf16>
    %c0_15 = arith.constant 0 : index
    %c0_16 = arith.constant 0 : index
    %c0_17 = arith.constant 0 : index
    %33 = vector.load %arg7[%c0_15, %c0_16, %c0_17] : memref<1x8x96xbf16, #tpu.memory_space<vmem>>, vector<1x8x96xbf16>
    %34 = vector.shape_cast %33 : vector<1x8x96xbf16> to vector<8x96xbf16>
    %35 = vector.shape_cast %32 : vector<8x96xbf16> to vector<1x8x96xbf16>
    tpu.vector_store %arg7[%c0_15, %c0_16, %c0_17], %35 {strides = array<i32>} : memref<1x8x96xbf16, #tpu.memory_space<vmem>>, vector<1x8x96xbf16>,
    return
  }
  func.func @transform_0(%arg0: i32, %arg1: i32) -> (i32, i32, i32) {
    %c0_i32 = arith.constant 0 : i32
    %c0_i32_0 = arith.constant 0 : i32
    return %arg0, %arg1, %c0_i32 : i32, i32, i32
  }
  func.func @transform_1(%arg0: i32, %arg1: i32) -> (i32, i32) {
    %c0_i32 = arith.constant 0 : i32
    %c0_i32_0 = arith.constant 0 : i32
    %c0_i32_1 = arith.constant 0 : i32
    return %c0_i32, %c0_i32_0 : i32, i32
  }
  func.func @transform_2(%arg0: i32, %arg1: i32) -> (i32, i32) {
    %c0_i32 = arith.constant 0 : i32
    %c0_i32_0 = arith.constant 0 : i32
    %c0_i32_1 = arith.constant 0 : i32
    return %c0_i32, %c0_i32_0 : i32, i32
  }
  func.func @transform_3(%arg0: i32, %arg1: i32) -> (i32, i32) {
    %c0_i32 = arith.constant 0 : i32
    %c0_i32_0 = arith.constant 0 : i32
    %c0_i32_1 = arith.constant 0 : i32
    return %c0_i32, %c0_i32_0 : i32, i32
  }
  func.func @transform_4(%arg0: i32, %arg1: i32) -> (i32, i32) {
    %c0_i32 = arith.constant 0 : i32
    %c0_i32_0 = arith.constant 0 : i32
    %c0_i32_1 = arith.constant 0 : i32
    return %c0_i32, %c0_i32_0 : i32, i32
  }
  func.func @transform_5(%arg0: i32, %arg1: i32) -> (i32, i32, i32) {
    %c0_i32 = arith.constant 0 : i32
    %c0_i32_0 = arith.constant 0 : i32
    return %arg0, %arg1, %c0_i32 : i32, i32, i32
  }
}

</mosaic_0001>

<llo_original>
// kernel: tpu_custom_call.1
$region0: #{tpu_custom_call.1}
  #allocation0 [shape = 'u32[]', space=smem, size = 0x4, offset = 0x4, fixed_abs, tag = 'smem constant byte address 0x4 - core index']
  #allocation1 [shape = 'u32[144,128]{1,0:T(1,128)}', space=vmem, size = 0x12000, scoped, tag = 'internal scratch']
  %s0 = inlined_call_operand.hbm [shape: f32[2,8,32], index: 0, kind: input, shape index: {}]
  %s1 = inlined_call_operand.vmem [shape: f32[1,32], index: 1, kind: input, shape index: {}]
  %s2 = inlined_call_operand.vmem [shape: f32[1,32], index: 2, kind: input, shape index: {}]
  %s3 = inlined_call_operand.hbm [shape: bf16[32,96], index: 3, kind: input, shape index: {}]
  %s4 = inlined_call_operand.vmem [shape: f32[1,96], index: 4, kind: input, shape index: {}]
  %s5 = inlined_call_operand.hbm [shape: bf16[2,8,96], index: 5, kind: output, shape index: {}]
  %s6 = sld [smem:[#allocation0]]
  $region61: #{tpu_custom_call.1} parent=0
    _
  %s8 = ssub.s32 1, %s6
  %s9 = scalar_select 0, %s8, %s6
  $region1: #{tpu_custom_call.1} parent=0
    #allocation2 [shape = 'u8[8192]{0}', space=vmem, size = 0x2000, scoped, tag = 'input window, operand 0']
    #allocation3 [shape = 's32[2]{0}', space=sflag, size = 0x8, scoped, tag = 'scoped memory for tpu_custom_call.1']
    #allocation4 [shape = 's32[2]{0}', space=sflag, size = 0x8, scoped, tag = 'scoped memory for tpu_custom_call.1']
    #allocation5 [shape = 'u8[8192]{0}', space=vmem, size = 0x2000, scoped, tag = 'input window, operand 3, single buffered']
    #allocation6 [shape = 's32[1]{0}', space=sflag, size = 0x4, scoped, tag = 'scoped memory for tpu_custom_call.1']
    #allocation7 [shape = 'u8[4096]{0}', space=vmem, size = 0x1000, scoped, tag = 'output window, operand 0']
    %10 = vsyncpa [#allocation3], 0
    %s11 = scalar_lea.sflag [#allocation3], 1
    %12 = vsyncpa %s11, 0
    %13 = vsyncpa [#allocation6], 0
    %14 = vsyncpa [#allocation4], 0
    %s15 = scalar_lea.sflag [#allocation4], 1
    %16 = vsyncpa %s15, 0
    loop: start=0, step=1, limit=4
    $region2: #{tpu_custom_call.1} parent=1 // loop_pre_header
      _
    $region3: #{tpu_custom_call.1} parent=1 // loop_header
      %s18 = sphi 0, %s22
      %p19 = scmp.ge.s32.totalorder %s18, 4
      %s25 = sphi 0, %s37
      %s26 = sphi 0, %s33
      %s27 = sphi 0, %s25
      %s28 = sphi 0, %s26
      %s29 = sphi 0, %s27
      %s30 = sphi 0, %s28
      %s42 = sphi 0, %s44
      %s45 = sphi 0, %s42
      %s46 = sphi 0, %s45
      %s62 = sphi 0, %s46
      %s66 = sphi 0, %s66
      %s68 = sphi 0, %s66
      %s69 = sphi 0, %s68
      %s83 = sphi 0, %s69
      %s87 = sphi 0, %s87
      %s89 = sphi 0, %s87
      %s90 = sphi 0, %s89
      %s104 = sphi 0, %s90
      %s108 = sphi 0, %s108
      %s110 = sphi 0, %s108
      %s111 = sphi 0, %s110
      %s125 = sphi 0, %s111
      %s129 = sphi 0, %s129
      %s131 = sphi 0, %s129
      %s132 = sphi 0, %s131
      %s146 = sphi 0, %s132
      %s154 = sphi 0, %s156
      %s157 = sphi 0, %s154
      %s158 = sphi 0, %s157
      %s174 = sphi 0, %s158
    $region4: #{tpu_custom_call.1} parent=1 // loop_header_branch
      %21 = sbr.rel (%p19) target = $region8
    $region5: #{tpu_custom_call.1} parent=1 // loop_body
      %s23 = ssub.s32 %s18, 1
      %s24 = ssub.s32 %s18, 2
      %s31 = sadd.s32 1, %s26
      %p32 = scmp.ge.s32.totalorder %s31, 1
      %s33 = scalar_select %p32, 0, %s31
      %s34 = sadd.s32 1, %s25
      %s35 = scalar_select %p32, %s34, %s25
      %p36 = scmp.ge.s32.totalorder %s35, 2
      %s37 = scalar_select %p36, 0, %s35
      %s38 = ssub.s32 %s25, %s37
      %s39 = ssub.s32 %s26, %s33
      %s40 = sor.u32 %s38, %s39
      %p41 = scmp.eq.s32.totalorder %s40, 0
      %s43 = sadd.s32 %s42, 1
      %s44 = scalar_select %p41, %s42, %s43
      %p47 = pneg %p41
      %p48 = scmp.eq.s32.totalorder %s18, 1
      %p49 = por %p47, %p48
      %p50 = scmp.ne.s32.totalorder %s42, %s45
      %p51 = scmp.eq.s32.totalorder %s18, 0
      %p52 = por %p50, %p51
      %p53 = scmp.ne.s32.totalorder %s42, %s45
      %p54 = scmp.eq.s32.totalorder %s23, 1
      %p55 = por %p53, %p54
      %p56 = scmp.ne.s32.totalorder %s45, %s46
      %p57 = scmp.eq.s32.totalorder %s23, 0
      %p58 = por %p56, %p57
      %p59 = scmp.ne.s32.totalorder %s45, %s46
      %p60 = scmp.eq.s32.totalorder %s24, 1
      %p61 = por %p59, %p60
      %p63 = scmp.ne.s32.totalorder %s46, %s62
      %p64 = scmp.eq.s32.totalorder %s24, 0
      %p65 = por %p63, %p64
      %s67 = sadd.s32 %s66, 1
      %p70 = scmp.eq.s32.totalorder %s18, 1
      %p71 = scmp.ne.s32.totalorder %s66, %s68
      %p72 = scmp.eq.s32.totalorder %s18, 0
      %p73 = por %p71, %p72
      %p74 = scmp.ne.s32.totalorder %s66, %s68
      %p75 = scmp.eq.s32.totalorder %s23, 1
      %p76 = por %p74, %p75
      %p77 = scmp.ne.s32.totalorder %s68, %s69
      %p78 = scmp.eq.s32.totalorder %s23, 0
      %p79 = por %p77, %p78
      %p80 = scmp.ne.s32.totalorder %s68, %s69
      %p81 = scmp.eq.s32.totalorder %s24, 1
      %p82 = por %p80, %p81
      %p84 = scmp.ne.s32.totalorder %s69, %s83
      %p85 = scmp.eq.s32.totalorder %s24, 0
      %p86 = por %p84, %p85
      %s88 = sadd.s32 %s87, 1
      %p91 = scmp.eq.s32.totalorder %s18, 1
      %p92 = scmp.ne.s32.totalorder %s87, %s89
      %p93 = scmp.eq.s32.totalorder %s18, 0
      %p94 = por %p92, %p93
      %p95 = scmp.ne.s32.totalorder %s87, %s89
      %p96 = scmp.eq.s32.totalorder %s23, 1
      %p97 = por %p95, %p96
      %p98 = scmp.ne.s32.totalorder %s89, %s90
      %p99 = scmp.eq.s32.totalorder %s23, 0
      %p100 = por %p98, %p99
      %p101 = scmp.ne.s32.totalorder %s89, %s90
      %p102 = scmp.eq.s32.totalorder %s24, 1
      %p103 = por %p101, %p102
      %p105 = scmp.ne.s32.totalorder %s90, %s104
      %p106 = scmp.eq.s32.totalorder %s24, 0
      %p107 = por %p105, %p106
      %s109 = sadd.s32 %s108, 1
      %p112 = scmp.eq.s32.totalorder %s18, 1
      %p113 = scmp.ne.s32.totalorder %s108, %s110
      %p114 = scmp.eq.s32.totalorder %s18, 0
      %p115 = por %p113, %p114
      %p116 = scmp.ne.s32.totalorder %s108, %s110
      %p117 = scmp.eq.s32.totalorder %s23, 1
      %p118 = por %p116, %p117
      %p119 = scmp.ne.s32.totalorder %s110, %s111
      %p120 = scmp.eq.s32.totalorder %s23, 0
      %p121 = por %p119, %p120
      %p122 = scmp.ne.s32.totalorder %s110, %s111
      %p123 = scmp.eq.s32.totalorder %s24, 1
      %p124 = por %p122, %p123
      %p126 = scmp.ne.s32.totalorder %s111, %s125
      %p127 = scmp.eq.s32.totalorder %s24, 0
      %p128 = por %p126, %p127
      %s130 = sadd.s32 %s129, 1
      %p133 = scmp.eq.s32.totalorder %s18, 1
      %p134 = scmp.ne.s32.totalorder %s129, %s131
      %p135 = scmp.eq.s32.totalorder %s18, 0
      %p136 = por %p134, %p135
      %p137 = scmp.ne.s32.totalorder %s129, %s131
      %p138 = scmp.eq.s32.totalorder %s23, 1
      %p139 = por %p137, %p138
      %p140 = scmp.ne.s32.totalorder %s131, %s132
      %p141 = scmp.eq.s32.totalorder %s23, 0
      %p142 = por %p140, %p141
      %p143 = scmp.ne.s32.totalorder %s131, %s132
      %p144 = scmp.eq.s32.totalorder %s24, 1
      %p145 = por %p143, %p144
      %p147 = scmp.ne.s32.totalorder %s132, %s146
      %p148 = scmp.eq.s32.totalorder %s24, 0
      %p149 = por %p147, %p148
      %s150 = ssub.s32 %s25, %s37
      %s151 = ssub.s32 %s26, %s33
      %s152 = sor.u32 %s150, %s151
      %p153 = scmp.eq.s32.totalorder %s152, 0
      %s155 = sadd.s32 %s154, 1
      %s156 = scalar_select %p153, %s154, %s155
      %p159 = pneg %p153
      %p160 = scmp.eq.s32.totalorder %s18, 1
      %p161 = por %p159, %p160
      %p162 = scmp.ne.s32.totalorder %s154, %s157
      %p163 = scmp.eq.s32.totalorder %s18, 0
      %p164 = por %p162, %p163
      %p165 = scmp.ne.s32.totalorder %s154, %s157
      %p166 = scmp.eq.s32.totalorder %s23, 1
      %p167 = por %p165, %p166
      %p168 = scmp.ne.s32.totalorder %s157, %s158
      %p169 = scmp.eq.s32.totalorder %s23, 0
      %p170 = por %p168, %p169
      %p171 = scmp.ne.s32.totalorder %s157, %s158
      %p172 = scmp.eq.s32.totalorder %s24, 1
      %p173 = por %p171, %p172
      %p175 = scmp.ne.s32.totalorder %s158, %s174
      %p176 = scmp.eq.s32.totalorder %s24, 0
      %p177 = por %p175, %p176
      %p178 = scmp.le.s32.totalorder 1, %s18
      %p179 = scmp.lt.s32.totalorder %s18, 3
      %p180 = pnand %p178, %p179
      %p181 = pneg %p180
      // Predicated region
      $region9: #{tpu_custom_call.1} parent=5 // pred_check
        _
      $region10: #{tpu_custom_call.1} parent=5 // pred_check_branch
        %183 = sbr.rel (%p180) target = $region12
      $region11: #{tpu_custom_call.1} parent=5 // pred_region
        %s184 = ssub.s32 %s18, 1
        // Predicated region
        $region13: #{tpu_custom_call.1} parent=11 // pred_check
          %p185 = pneg %p79
        $region14: #{tpu_custom_call.1} parent=11 // pred_check_branch
          %187 = sbr.rel (%p185) target = $region16
        $region15: #{tpu_custom_call.1} parent=11 // pred_region
          _
        $region16: #{tpu_custom_call.1} parent=11 // pred_fallthru
          _
        // Predicated region
        $region17: #{tpu_custom_call.1} parent=11 // pred_check
          %p188 = pneg %p100
        $region18: #{tpu_custom_call.1} parent=11 // pred_check_branch
          %190 = sbr.rel (%p188) target = $region20
        $region19: #{tpu_custom_call.1} parent=11 // pred_region
          _
        $region20: #{tpu_custom_call.1} parent=11 // pred_fallthru
          _
        // Predicated region
        $region21: #{tpu_custom_call.1} parent=11 // pred_check
          %p191 = pneg %p121
        $region22: #{tpu_custom_call.1} parent=11 // pred_check_branch
          %193 = sbr.rel (%p191) target = $region24
        $region23: #{tpu_custom_call.1} parent=11 // pred_region
          %s195 = ssub.s32 256, 256
          %196 = vsyncadd [#allocation6], %s195
          %s197 = sshll.u32 [#allocation5], 4
          %s198 = int_to_ptr.vmem [resolvable:$true] %s197
          %203 = dma.hbm_to_vmem [thread:$0]  %s3, 256, %s198, [#allocation6], 64, 64, 4
        $region24: #{tpu_custom_call.1} parent=11 // pred_fallthru
          _
        // Predicated region
        $region25: #{tpu_custom_call.1} parent=11 // pred_check
          %p204 = pneg %p142
        $region26: #{tpu_custom_call.1} parent=11 // pred_check_branch
          %206 = sbr.rel (%p204) target = $region28
        $region27: #{tpu_custom_call.1} parent=11 // pred_region
          _
        $region28: #{tpu_custom_call.1} parent=11 // pred_fallthru
          _
      $region12: #{tpu_custom_call.1} parent=5 // pred_fallthru
        _
      %p207 = scmp.lt.s32.totalorder %s18, 2
      // Predicated region
      $region29: #{tpu_custom_call.1} parent=5 // pred_check
        %p208 = pneg %p207
      $region30: #{tpu_custom_call.1} parent=5 // pred_check_branch
        %210 = sbr.rel (%p208) target = $region32
      $region31: #{tpu_custom_call.1} parent=5 // pred_region
        // Predicated region
        $region33: #{tpu_custom_call.1} parent=31 // pred_check
          %p211 = pneg %p52
        $region34: #{tpu_custom_call.1} parent=31 // pred_check_branch
          %213 = sbr.rel (%p211) target = $region36
        $region35: #{tpu_custom_call.1} parent=31 // pred_region
          %s214 = sand.u32 %s42, 1
          %s215 = scalar_lea.sflag [#allocation3], %s214
          %s216 = sand.u32 %s42, 1
          %s217 = smul.addr %s216, 8
          %s218 = scalar_lea.vmem [#allocation2], %s217
          %s220 = ssub.s32 128, 128
          %221 = vsyncadd %s215, %s220
          %s222 = sadd.s32 %s26, %s25
          %s223 = smul.addr %s222, 128
          %s224 = scalar_lea.hbm %s0, %s223
          %s226 = sshll.u32 %s218, 4
          %s227 = int_to_ptr.vmem [resolvable:$true] %s226
          %229 = dma.hbm_to_vmem [thread:$0]  %s224, 128, %s227, %s215
        $region36: #{tpu_custom_call.1} parent=31 // pred_fallthru
          _
      $region32: #{tpu_custom_call.1} parent=5 // pred_fallthru
        _
      %p230 = scmp.le.s32.totalorder 1, %s18
      %p231 = scmp.lt.s32.totalorder %s18, 3
      %p232 = pnand %p230, %p231
      %p233 = pneg %p232
      // Predicated region
      $region37: #{tpu_custom_call.1} parent=5 // pred_check
        _
      $region38: #{tpu_custom_call.1} parent=5 // pred_check_branch
        %235 = sbr.rel (%p232) target = $region40
      $region39: #{tpu_custom_call.1} parent=5 // pred_region
        %s236 = ssub.s32 %s18, 1
        %s237 = sand.u32 %s45, 1
        %s238 = scalar_lea.sflag [#allocation3], %s237
        %s239 = sand.u32 %s45, 1
        %s240 = smul.addr %s239, 8
        %s241 = scalar_lea.vmem [#allocation2], %s240
        // Predicated region
        $region41: #{tpu_custom_call.1} parent=39 // pred_check
          %p242 = pneg %p58
        $region42: #{tpu_custom_call.1} parent=39 // pred_check_branch
          %244 = sbr.rel (%p242) target = $region44
        $region43: #{tpu_custom_call.1} parent=39 // pred_region
          %245 = dma.done %s238, 128
        $region44: #{tpu_custom_call.1} parent=39 // pred_fallthru
          _
        // Predicated region
        $region45: #{tpu_custom_call.1} parent=39 // pred_check
          %p246 = pneg %p121
        $region46: #{tpu_custom_call.1} parent=39 // pred_check_branch
          %248 = sbr.rel (%p246) target = $region48
        $region47: #{tpu_custom_call.1} parent=39 // pred_region
          %249 = dma.done [#allocation6], 256
        $region48: #{tpu_custom_call.1} parent=39 // pred_fallthru
          _
        %s250 = sand.u32 %s45, 1
        %s251 = scalar_lea.sflag [#allocation3], %s250
        %s252 = sand.u32 %s45, 1
        %s253 = smul.addr %s252, 8
        %s254 = scalar_lea.vmem [#allocation2], %s253
        %p255 = pneg %p58
        %p256 = pneg %p55
        %p257 = pneg %p79
        %p258 = pneg %p76
        %p259 = pneg %p100
        %p260 = pneg %p97
        %p261 = pneg %p121
        %p262 = pneg %p118
        %p263 = pneg %p142
        %p264 = pneg %p139
        %p265 = pneg %p170
        %p266 = pneg %p167
        %s267 = sand.u32 %s157, 1
        %s268 = scalar_lea.sflag [#allocation4], %s267
        %s269 = sand.u32 %s157, 1
        %s270 = smul.addr %s269, 4
        %s271 = scalar_lea.vmem [#allocation7], %s270
        %v273 = vld [vmem:[%s241] sm:$0xff]
        %v274 = vld [vmem:[%s1] sm:$0x1]
        %v275 = vld [vmem:[%s2] sm:$0x1]
        %vm276 = vcmask 261120
        %v277 = vsel %vm276, %v273, 0.0
        %278 = vadd.xlane.f32.xlu0 %v277
        %v279 = vpop.xlane.xlu0 %278
        %v280 = vrcp.pop 32.0
        %v281 = vmul.f32 %v279, %v280
        %v282 = vsub.f32 %v273, %v281
        %v283 = vmul.f32 %v282, %v282
        %v284 = vsel %vm276, %v283, 0.0
        %285 = vadd.xlane.f32.xlu0 %v284
        %v286 = vpop.xlane.xlu0 %285
        %v287 = vmul.f32 %v286, %v280
        %v288 = vadd.f32 %v287, 1e-05
        %v289 = vrsqrt.pop %v288
        %v290 = vmul.f32 %v282, %v289
        %v292 = vlaneseq
        %v293 = vshrl.u32 %v292, 7
        %v294 = vsub.s32 0, %v293
        %v295 = vrot.slane %v274, %v294
        %v297 = vmul.f32 %v290, %v295
        %v299 = vlaneseq
        %v300 = vshrl.u32 %v299, 7
        %v301 = vsub.s32 0, %v300
        %v302 = vrot.slane %v275, %v301
        %v304 = vadd.f32 %v297, %v302
        %v305 = vpack.c.bf16 %v304, %v304
        %v306 = vld [vmem:[#allocation5] sm:$0xf]
        %v307 = vld [vmem:[#allocation5 + $0x4] sm:$0xf]
        %v308 = vld [vmem:[#allocation5 + $0x8] sm:$0xf]
        %v309 = vld [vmem:[#allocation5 + $0xc] sm:$0xf]
        %v310 = vld [vmem:[%s4] sm:$0x1]
        %v312 = vlaneseq
        %v313 = vshrl.u32 %v312, 7
        %v314 = vsub.s32 0, %v313
        %v315 = vrot.slane %v310, %v314
        %v321 = vunpack.c.l.b16 %v306
        %v322 = vunpack.c.l.b16 %v307
        %v323 = vunpack.c.l.b16 %v308
        %v324 = vunpack.c.l.b16 %v309
        %v325 = vpack.c.b16 %v322, %v321
        %v326 = vpack.c.b16 %v324, %v323
        %v330 = vsel %vm276, %v305, 0
        %332 = vmatprep.subr.bf16.mxu0 0
        %333 = vmatpush1.bf16.msra.mxu0 %v325
        %334 = vmatprep.subr.bf16.mxu0 0
        %335 = vmatpush1.bf16.msra.mxu0 %v326
        %336 = vmatprep.subr.bf16.mxu0 0
        %337 = vmatpush1.bf16.msra.mxu0 0
        %338 = vmatprep.subr.bf16.mxu0 0
        %339 = vmatpush1.bf16.msra.mxu0 0
        %340 = vmatprep.subr.bf16.mxu0 0
        %341 = vmatpush1.bf16.msra.mxu0 0
        %342 = vmatprep.subr.bf16.mxu0 0
        %343 = vmatpush1.bf16.msra.mxu0 0
        %344 = vmatprep.subr.bf16.mxu0 0
        %345 = vmatpush1.bf16.msra.mxu0 0
        %346 = vmatprep.subr.bf16.mxu0 0
        %347 = vmatpush1.bf16.msra.mxu0 0
        %348 = vmatprep.subr.bf16.mxu0 0
        %349 = vmatpush1.bf16.msra.mxu0 0
        %350 = vmatprep.subr.bf16.mxu0 0
        %351 = vmatpush1.bf16.msra.mxu0 0
        %352 = vmatprep.subr.bf16.mxu0 0
        %353 = vmatpush1.bf16.msra.mxu0 0
        %354 = vmatprep.subr.bf16.mxu0 0
        %355 = vmatpush1.bf16.msra.mxu0 0
        %356 = vmatprep.subr.bf16.mxu0 0
        %357 = vmatpush1.bf16.msra.mxu0 0
        %358 = vmatprep.subr.bf16.mxu0 0
        %359 = vmatpush1.bf16.msra.mxu0 0
        %360 = vmatprep.subr.bf16.mxu0 0
        %361 = vmatpush1.bf16.msra.mxu0 0
        %362 = vmatprep.subr.bf16.mxu0 0
        %363 = vmatpush1.bf16.msra.mxu0 0
        %364 = vmatprep.mubr.bf16.mxu0 0
        %365 = vmatmul.mubr.bf16.gmra.mrb[0].mxu0 %v330
        %v366 = vpop.f32.mrb[0].mxu0
        %v367 = vadd.f32 %v315, %v366
        %v368 = vpop.f32.mrb[0].mxu0
        %v369 = vpop.f32.mrb[0].mxu0
        %v370 = vpop.f32.mrb[0].mxu0
        %371 = vdwg.mxu0
        %v372 = vpack.c.bf16 %v367, %v367
        %vm373 = vcmask 781312
        %374 = vst.msk [vmem:[%s271] sm:$0xf] %vm373, %v372
        %s375 = sand.u32 %s157, 1
        %s376 = scalar_lea.sflag [#allocation4], %s375
        %s377 = sand.u32 %s157, 1
        %s378 = smul.addr %s377, 4
        %s379 = scalar_lea.vmem [#allocation7], %s378
        // Predicated region
        $region49: #{tpu_custom_call.1} parent=39 // pred_check
          %p380 = pneg %p167
        $region50: #{tpu_custom_call.1} parent=39 // pred_check_branch
          %382 = sbr.rel (%p380) target = $region52
        $region51: #{tpu_custom_call.1} parent=39 // pred_region
          %s384 = ssub.s32 64, 64
          %385 = vsyncadd %s376, %s384
          %s386 = sadd.s32 %s28, %s27
          %s387 = smul.addr %s386, 64
          %s388 = scalar_lea.hbm %s5, %s387
          %s390 = sshll.u32 %s379, 4
          %s391 = int_to_ptr.vmem [resolvable:$true] %s390
          %393 = dma.vmem_to_hbm [thread:$0]  %s391, 64, %s388, %s376
        $region52: #{tpu_custom_call.1} parent=39 // pred_fallthru
          _
      $region40: #{tpu_custom_call.1} parent=5 // pred_fallthru
        _
      %p394 = scmp.le.s32.totalorder 2, %s18
      // Predicated region
      $region53: #{tpu_custom_call.1} parent=5 // pred_check
        %p395 = pneg %p394
      $region54: #{tpu_custom_call.1} parent=5 // pred_check_branch
        %397 = sbr.rel (%p395) target = $region56
      $region55: #{tpu_custom_call.1} parent=5 // pred_region
        %s398 = ssub.s32 %s18, 2
        // Predicated region
        $region57: #{tpu_custom_call.1} parent=55 // pred_check
          %p399 = pneg %p173
        $region58: #{tpu_custom_call.1} parent=55 // pred_check_branch
          %401 = sbr.rel (%p399) target = $region60
        $region59: #{tpu_custom_call.1} parent=55 // pred_region
          %s402 = sand.u32 %s158, 1
          %s403 = scalar_lea.sflag [#allocation4], %s402
          %s404 = sand.u32 %s158, 1
          %s405 = smul.addr %s404, 4
          %s406 = scalar_lea.vmem [#allocation7], %s405
          %407 = dma.done %s403, 64
        $region60: #{tpu_custom_call.1} parent=55 // pred_fallthru
          _
      $region56: #{tpu_custom_call.1} parent=5 // pred_fallthru
        _
    $region6: #{tpu_custom_call.1} parent=1 // loop_footer
      %s22 = sadd.s32 1, %s18
    $region7: #{tpu_custom_call.1} parent=1 // loop_footer_branch
      %17 = sbr.rel target = $region3
    $region8: #{tpu_custom_call.1} parent=1 // loop_exit
      _
    %408 = vsyncpa [#allocation3], 1
    %s409 = scalar_lea.sflag [#allocation3], 1
    %410 = vsyncpa %s409, 1
    %411 = vsyncpa [#allocation6], 1
    %412 = vsyncpa [#allocation4], 1
    %s413 = scalar_lea.sflag [#allocation4], 1
    %414 = vsyncpa %s413, 1

// kernel: tpu_custom_call.1
$region0: #{tpu_custom_call.1}
  #allocation0 [shape = 'u32[]', space=smem, size = 0x4, offset = 0x4, fixed_abs, tag = 'smem constant byte address 0x4 - core index']
  #allocation1 [shape = 'u32[144,128]{1,0:T(1,128)}', space=vmem, size = 0x12000, scoped, tag = 'internal scratch']
  %s0 = inlined_call_operand.hbm [shape: f32[2,8,32], index: 0, kind: input, shape index: {}]
  %s1 = inlined_call_operand.vmem [shape: f32[1,32], index: 1, kind: input, shape index: {}]
  %s2 = inlined_call_operand.vmem [shape: f32[1,32], index: 2, kind: input, shape index: {}]
  %s3 = inlined_call_operand.hbm [shape: bf16[32,96], index: 3, kind: input, shape index: {}]
  %s4 = inlined_call_operand.vmem [shape: f32[1,96], index: 4, kind: input, shape index: {}]
  %s5 = inlined_call_operand.hbm [shape: bf16[2,8,96], index: 5, kind: output, shape index: {}]
  %s6 = sld [smem:[#allocation0]]
  $region61: #{tpu_custom_call.1} parent=0
    _
  %s8 = ssub.s32 1, %s6
  %s9 = scalar_select 0, %s8, %s6
  $region1: #{tpu_custom_call.1} parent=0
    #allocation2 [shape = 'u8[8192]{0}', space=vmem, size = 0x2000, scoped, tag = 'input window, operand 0']
    #allocation3 [shape = 's32[2]{0}', space=sflag, size = 0x8, scoped, tag = 'scoped memory for tpu_custom_call.1']
    #allocation4 [shape = 's32[2]{0}', space=sflag, size = 0x8, scoped, tag = 'scoped memory for tpu_custom_call.1']
    #allocation5 [shape = 'u8[8192]{0}', space=vmem, size = 0x2000, scoped, tag = 'input window, operand 3, single buffered']
    #allocation6 [shape = 's32[1]{0}', space=sflag, size = 0x4, scoped, tag = 'scoped memory for tpu_custom_call.1']
    #allocation7 [shape = 'u8[4096]{0}', space=vmem, size = 0x1000, scoped, tag = 'output window, operand 0']
    %10 = vsyncpa [#allocation3], 0
    %s11 = scalar_lea.sflag [#allocation3], 1
    %12 = vsyncpa %s11, 0
    %13 = vsyncpa [#allocation6], 0
    %14 = vsyncpa [#allocation4], 0
    %s15 = scalar_lea.sflag [#allocation4], 1
    %16 = vsyncpa %s15, 0
    loop: start=0, step=1, limit=4
    $region2: #{tpu_custom_call.1} parent=1 // loop_pre_header
      _
    $region3: #{tpu_custom_call.1} parent=1 // loop_header
      %s18 = sphi 0, %s22
      %p19 = scmp.ge.s32.totalorder %s18, 4
      %s25 = sphi 0, %s37
      %s26 = sphi 0, %s33
      %s27 = sphi 0, %s25
      %s28 = sphi 0, %s26
      %s29 = sphi 0, %s27
      %s30 = sphi 0, %s28
      %s42 = sphi 0, %s44
      %s45 = sphi 0, %s42
      %s46 = sphi 0, %s45
      %s62 = sphi 0, %s46
      %s66 = sphi 0, %s66
      %s68 = sphi 0, %s66
      %s69 = sphi 0, %s68
      %s83 = sphi 0, %s69
      %s87 = sphi 0, %s87
      %s89 = sphi 0, %s87
      %s90 = sphi 0, %s89
      %s104 = sphi 0, %s90
      %s108 = sphi 0, %s108
      %s110 = sphi 0, %s108
      %s111 = sphi 0, %s110
      %s125 = sphi 0, %s111
      %s129 = sphi 0, %s129
      %s131 = sphi 0, %s129
      %s132 = sphi 0, %s131
      %s146 = sphi 0, %s132
      %s154 = sphi 0, %s156
      %s157 = sphi 0, %s154
      %s158 = sphi 0, %s157
      %s174 = sphi 0, %s158
    $region4: #{tpu_custom_call.1} parent=1 // loop_header_branch
      %21 = sbr.rel (%p19) target = $region8
    $region5: #{tpu_custom_call.1} parent=1 // loop_body
      %s23 = ssub.s32 %s18, 1
      %s24 = ssub.s32 %s18, 2
      %s31 = sadd.s32 1, %s26
      %p32 = scmp.ge.s32.totalorder %s31, 1
      %s33 = scalar_select %p32, 0, %s31
      %s34 = sadd.s32 1, %s25
      %s35 = scalar_select %p32, %s34, %s25
      %p36 = scmp.ge.s32.totalorder %s35, 2
      %s37 = scalar_select %p36, 0, %s35
      %s38 = ssub.s32 %s25, %s37
      %s39 = ssub.s32 %s26, %s33
      %s40 = sor.u32 %s38, %s39
      %p41 = scmp.eq.s32.totalorder %s40, 0
      %s43 = sadd.s32 %s42, 1
      %s44 = scalar_select %p41, %s42, %s43
      %p47 = pneg %p41
      %p48 = scmp.eq.s32.totalorder %s18, 1
      %p49 = por %p47, %p48
      %p50 = scmp.ne.s32.totalorder %s42, %s45
      %p51 = scmp.eq.s32.totalorder %s18, 0
      %p52 = por %p50, %p51
      %p53 = scmp.ne.s32.totalorder %s42, %s45
      %p54 = scmp.eq.s32.totalorder %s23, 1
      %p55 = por %p53, %p54
      %p56 = scmp.ne.s32.totalorder %s45, %s46
      %p57 = scmp.eq.s32.totalorder %s23, 0
      %p58 = por %p56, %p57
      %p59 = scmp.ne.s32.totalorder %s45, %s46
      %p60 = scmp.eq.s32.totalorder %s24, 1
      %p61 = por %p59, %p60
      %p63 = scmp.ne.s32.totalorder %s46, %s62
      %p64 = scmp.eq.s32.totalorder %s24, 0
      %p65 = por %p63, %p64
      %s67 = sadd.s32 %s66, 1
      %p70 = scmp.eq.s32.totalorder %s18, 1
      %p71 = scmp.ne.s32.totalorder %s66, %s68
      %p72 = scmp.eq.s32.totalorder %s18, 0
      %p73 = por %p71, %p72
      %p74 = scmp.ne.s32.totalorder %s66, %s68
      %p75 = scmp.eq.s32.totalorder %s23, 1
      %p76 = por %p74, %p75
      %p77 = scmp.ne.s32.totalorder %s68, %s69
      %p78 = scmp.eq.s32.totalorder %s23, 0
      %p79 = por %p77, %p78
      %p80 = scmp.ne.s32.totalorder %s68, %s69
      %p81 = scmp.eq.s32.totalorder %s24, 1
      %p82 = por %p80, %p81
      %p84 = scmp.ne.s32.totalorder %s69, %s83
      %p85 = scmp.eq.s32.totalorder %s24, 0
      %p86 = por %p84, %p85
      %s88 = sadd.s32 %s87, 1
      %p91 = scmp.eq.s32.totalorder %s18, 1
      %p92 = scmp.ne.s32.totalorder %s87, %s89
      %p93 = scmp.eq.s32.totalorder %s18, 0
      %p94 = por %p92, %p93
      %p95 = scmp.ne.s32.totalorder %s87, %s89
      %p96 = scmp.eq.s32.totalorder %s23, 1
      %p97 = por %p95, %p96
      %p98 = scmp.ne.s32.totalorder %s89, %s90
      %p99 = scmp.eq.s32.totalorder %s23, 0
      %p100 = por %p98, %p99
      %p101 = scmp.ne.s32.totalorder %s89, %s90
      %p102 = scmp.eq.s32.totalorder %s24, 1
      %p103 = por %p101, %p102
      %p105 = scmp.ne.s32.totalorder %s90, %s104
      %p106 = scmp.eq.s32.totalorder %s24, 0
      %p107 = por %p105, %p106
      %s109 = sadd.s32 %s108, 1
      %p112 = scmp.eq.s32.totalorder %s18, 1
      %p113 = scmp.ne.s32.totalorder %s108, %s110
      %p114 = scmp.eq.s32.totalorder %s18, 0
      %p115 = por %p113, %p114
      %p116 = scmp.ne.s32.totalorder %s108, %s110
      %p117 = scmp.eq.s32.totalorder %s23, 1
      %p118 = por %p116, %p117
      %p119 = scmp.ne.s32.totalorder %s110, %s111
      %p120 = scmp.eq.s32.totalorder %s23, 0
      %p121 = por %p119, %p120
      %p122 = scmp.ne.s32.totalorder %s110, %s111
      %p123 = scmp.eq.s32.totalorder %s24, 1
      %p124 = por %p122, %p123
      %p126 = scmp.ne.s32.totalorder %s111, %s125
      %p127 = scmp.eq.s32.totalorder %s24, 0
      %p128 = por %p126, %p127
      %s130 = sadd.s32 %s129, 1
      %p133 = scmp.eq.s32.totalorder %s18, 1
      %p134 = scmp.ne.s32.totalorder %s129, %s131
      %p135 = scmp.eq.s32.totalorder %s18, 0
      %p136 = por %p134, %p135
      %p137 = scmp.ne.s32.totalorder %s129, %s131
      %p138 = scmp.eq.s32.totalorder %s23, 1
      %p139 = por %p137, %p138
      %p140 = scmp.ne.s32.totalorder %s131, %s132
      %p141 = scmp.eq.s32.totalorder %s23, 0
      %p142 = por %p140, %p141
      %p143 = scmp.ne.s32.totalorder %s131, %s132
      %p144 = scmp.eq.s32.totalorder %s24, 1
      %p145 = por %p143, %p144
      %p147 = scmp.ne.s32.totalorder %s132, %s146
      %p148 = scmp.eq.s32.totalorder %s24, 0
      %p149 = por %p147, %p148
      %s150 = ssub.s32 %s25, %s37
      %s151 = ssub.s32 %s26, %s33
      %s152 = sor.u32 %s150, %s151
      %p153 = scmp.eq.s32.totalorder %s152, 0
      %s155 = sadd.s32 %s154, 1
      %s156 = scalar_select %p153, %s154, %s155
      %p159 = pneg %p153
      %p160 = scmp.eq.s32.totalorder %s18, 1
      %p161 = por %p159, %p160
      %p162 = scmp.ne.s32.totalorder %s154, %s157
      %p163 = scmp.eq.s32.totalorder %s18, 0
      %p164 = por %p162, %p163
      %p165 = scmp.ne.s32.totalorder %s154, %s157
      %p166 = scmp.eq.s32.totalorder %s23, 1
      %p167 = por %p165, %p166
      %p168 = scmp.ne.s32.totalorder %s157, %s158
      %p169 = scmp.eq.s32.totalorder %s23, 0
      %p170 = por %p168, %p169
      %p171 = scmp.ne.s32.totalorder %s157, %s158
      %p172 = scmp.eq.s32.totalorder %s24, 1
      %p173 = por %p171, %p172
      %p175 = scmp.ne.s32.totalorder %s158, %s174
      %p176 = scmp.eq.s32.totalorder %s24, 0
      %p177 = por %p175, %p176
      %p178 = scmp.le.s32.totalorder 1, %s18
      %p179 = scmp.lt.s32.totalorder %s18, 3
      %p180 = pnand %p178, %p179
      %p181 = pneg %p180
      // Predicated region
      $region9: #{tpu_custom_call.1} parent=5 // pred_check
        _
      $region10: #{tpu_custom_call.1} parent=5 // pred_check_branch
        %183 = sbr.rel (%p180) target = $region12
      $region11: #{tpu_custom_call.1} parent=5 // pred_region
        %s184 = ssub.s32 %s18, 1
        // Predicated region
        $region13: #{tpu_custom_call.1} parent=11 // pred_check
          %p185 = pneg %p79
        $region14: #{tpu_custom_call.1} parent=11 // pred_check_branch
          %187 = sbr.rel (%p185) target = $region16
        $region15: #{tpu_custom_call.1} parent=11 // pred_region
          _
        $region16: #{tpu_custom_call.1} parent=11 // pred_fallthru
          _
        // Predicated region
        $region17: #{tpu_custom_call.1} parent=11 // pred_check
          %p188 = pneg %p100
        $region18: #{tpu_custom_call.1} parent=11 // pred_check_branch
          %190 = sbr.rel (%p188) target = $region20
        $region19: #{tpu_custom_call.1} parent=11 // pred_region
          _
        $region20: #{tpu_custom_call.1} parent=11 // pred_fallthru
          _
        // Predicated region
        $region21: #{tpu_custom_call.1} parent=11 // pred_check
          %p191 = pneg %p121
        $region22: #{tpu_custom_call.1} parent=11 // pred_check_branch
          %193 = sbr.rel (%p191) target = $region24
        $region23: #{tpu_custom_call.1} parent=11 // pred_region
          %s195 = ssub.s32 256, 256
          %196 = vsyncadd [#allocation6], %s195
          %s197 = sshll.u32 [#allocation5], 4
          %s198 = int_to_ptr.vmem [resolvable:$true] %s197
          %203 = dma.hbm_to_vmem [thread:$0]  %s3, 256, %s198, [#allocation6], 64, 64, 4
        $region24: #{tpu_custom_call.1} parent=11 // pred_fallthru
          _
        // Predicated region
        $region25: #{tpu_custom_call.1} parent=11 // pred_check
          %p204 = pneg %p142
        $region26: #{tpu_custom_call.1} parent=11 // pred_check_branch
          %206 = sbr.rel (%p204) target = $region28
        $region27: #{tpu_custom_call.1} parent=11 // pred_region
          _
        $region28: #{tpu_custom_call.1} parent=11 // pred_fallthru
          _
      $region12: #{tpu_custom_call.1} parent=5 // pred_fallthru
        _
      %p207 = scmp.lt.s32.totalorder %s18, 2
      // Predicated region
      $region29: #{tpu_custom_call.1} parent=5 // pred_check
        %p208 = pneg %p207
      $region30: #{tpu_custom_call.1} parent=5 // pred_check_branch
        %210 = sbr.rel (%p208) target = $region32
      $region31: #{tpu_custom_call.1} parent=5 // pred_region
        // Predicated region
        $region33: #{tpu_custom_call.1} parent=31 // pred_check
          %p211 = pneg %p52
        $region34: #{tpu_custom_call.1} parent=31 // pred_check_branch
          %213 = sbr.rel (%p211) target = $region36
        $region35: #{tpu_custom_call.1} parent=31 // pred_region
          %s214 = sand.u32 %s42, 1
          %s215 = scalar_lea.sflag [#allocation3], %s214
          %s216 = sand.u32 %s42, 1
          %s217 = smul.addr %s216, 8
          %s218 = scalar_lea.vmem [#allocation2], %s217
          %s220 = ssub.s32 128, 128
          %221 = vsyncadd %s215, %s220
          %s222 = sadd.s32 %s26, %s25
          %s223 = smul.addr %s222, 128
          %s224 = scalar_lea.hbm %s0, %s223
          %s226 = sshll.u32 %s218, 4
          %s227 = int_to_ptr.vmem [resolvable:$true] %s226
          %229 = dma.hbm_to_vmem [thread:$0]  %s224, 128, %s227, %s215
        $region36: #{tpu_custom_call.1} parent=31 // pred_fallthru
          _
      $region32: #{tpu_custom_call.1} parent=5 // pred_fallthru
        _
      %p230 = scmp.le.s32.totalorder 1, %s18
      %p231 = scmp.lt.s32.totalorder %s18, 3
      %p232 = pnand %p230, %p231
      %p233 = pneg %p232
      // Predicated region
      $region37: #{tpu_custom_call.1} parent=5 // pred_check
        _
      $region38: #{tpu_custom_call.1} parent=5 // pred_check_branch
        %235 = sbr.rel (%p232) target = $region40
      $region39: #{tpu_custom_call.1} parent=5 // pred_region
        %s236 = ssub.s32 %s18, 1
        %s237 = sand.u32 %s45, 1
        %s238 = scalar_lea.sflag [#allocation3], %s237
        %s239 = sand.u32 %s45, 1
        %s240 = smul.addr %s239, 8
        %s241 = scalar_lea.vmem [#allocation2], %s240
        // Predicated region
        $region41: #{tpu_custom_call.1} parent=39 // pred_check
          %p242 = pneg %p58
        $region42: #{tpu_custom_call.1} parent=39 // pred_check_branch
          %244 = sbr.rel (%p242) target = $region44
        $region43: #{tpu_custom_call.1} parent=39 // pred_region
          %245 = dma.done %s238, 128
        $region44: #{tpu_custom_call.1} parent=39 // pred_fallthru
          _
        // Predicated region
        $region45: #{tpu_custom_call.1} parent=39 // pred_check
          %p246 = pneg %p121
        $region46: #{tpu_custom_call.1} parent=39 // pred_check_branch
          %248 = sbr.rel (%p246) target = $region48
        $region47: #{tpu_custom_call.1} parent=39 // pred_region
          %249 = dma.done [#allocation6], 256
        $region48: #{tpu_custom_call.1} parent=39 // pred_fallthru
          _
        %s250 = sand.u32 %s45, 1
        %s251 = scalar_lea.sflag [#allocation3], %s250
        %s252 = sand.u32 %s45, 1
        %s253 = smul.addr %s252, 8
        %s254 = scalar_lea.vmem [#allocation2], %s253
        %p255 = pneg %p58
        %p256 = pneg %p55
        %p257 = pneg %p79
        %p258 = pneg %p76
        %p259 = pneg %p100
        %p260 = pneg %p97
        %p261 = pneg %p121
        %p262 = pneg %p118
        %p263 = pneg %p142
        %p264 = pneg %p139
        %p265 = pneg %p170
        %p266 = pneg %p167
        %s267 = sand.u32 %s157, 1
        %s268 = scalar_lea.sflag [#allocation4], %s267
        %s269 = sand.u32 %s157, 1
        %s270 = smul.addr %s269, 4
        %s271 = scalar_lea.vmem [#allocation7], %s270
        %v273 = vld [vmem:[%s241] sm:$0xff]
        %v274 = vld [vmem:[%s1] sm:$0x1]
        %v275 = vld [vmem:[%s2] sm:$0x1]
        %vm276 = vcmask 261120
        %v277 = vsel %vm276, %v273, 0.0
        %278 = vadd.xlane.f32.xlu0 %v277
        %v279 = vpop.xlane.xlu0 %278
        %v280 = vrcp.pop 32.0
        %v281 = vmul.f32 %v279, %v280
        %v282 = vsub.f32 %v273, %v281
        %v283 = vmul.f32 %v282, %v282
        %v284 = vsel %vm276, %v283, 0.0
        %285 = vadd.xlane.f32.xlu0 %v284
        %v286 = vpop.xlane.xlu0 %285
        %v287 = vmul.f32 %v286, %v280
        %v288 = vadd.f32 %v287, 1e-05
        %v289 = vrsqrt.pop %v288
        %v290 = vmul.f32 %v282, %v289
        %v292 = vlaneseq
        %v293 = vshrl.u32 %v292, 7
        %v294 = vsub.s32 0, %v293
        %v295 = vrot.slane %v274, %v294
        %v297 = vmul.f32 %v290, %v295
        %v299 = vlaneseq
        %v300 = vshrl.u32 %v299, 7
        %v301 = vsub.s32 0, %v300
        %v302 = vrot.slane %v275, %v301
        %v304 = vadd.f32 %v297, %v302
        %v305 = vpack.c.bf16 %v304, %v304
        %v306 = vld [vmem:[#allocation5] sm:$0xf]
        %v307 = vld [vmem:[#allocation5 + $0x4] sm:$0xf]
        %v308 = vld [vmem:[#allocation5 + $0x8] sm:$0xf]
        %v309 = vld [vmem:[#allocation5 + $0xc] sm:$0xf]
        %v310 = vld [vmem:[%s4] sm:$0x1]
        %v312 = vlaneseq
        %v313 = vshrl.u32 %v312, 7
        %v314 = vsub.s32 0, %v313
        %v315 = vrot.slane %v310, %v314
        %v321 = vunpack.c.l.b16 %v306
        %v322 = vunpack.c.l.b16 %v307
        %v323 = vunpack.c.l.b16 %v308
        %v324 = vunpack.c.l.b16 %v309
        %v325 = vpack.c.b16 %v322, %v321
        %v326 = vpack.c.b16 %v324, %v323
        %v330 = vsel %vm276, %v305, 0
        %332 = vmatprep.subr.bf16.mxu0 0
        %333 = vmatpush1.bf16.msra.mxu0 %v325
        %334 = vmatprep.subr.bf16.mxu0 0
        %335 = vmatpush1.bf16.msra.mxu0 %v326
        %336 = vmatprep.subr.bf16.mxu0 0
        %337 = vmatpush1.bf16.msra.mxu0 0
        %338 = vmatprep.subr.bf16.mxu0 0
        %339 = vmatpush1.bf16.msra.mxu0 0
        %340 = vmatprep.subr.bf16.mxu0 0
        %341 = vmatpush1.bf16.msra.mxu0 0
        %342 = vmatprep.subr.bf16.mxu0 0
        %343 = vmatpush1.bf16.msra.mxu0 0
        %344 = vmatprep.subr.bf16.mxu0 0
        %345 = vmatpush1.bf16.msra.mxu0 0
        %346 = vmatprep.subr.bf16.mxu0 0
        %347 = vmatpush1.bf16.msra.mxu0 0
        %348 = vmatprep.subr.bf16.mxu0 0
        %349 = vmatpush1.bf16.msra.mxu0 0
        %350 = vmatprep.subr.bf16.mxu0 0
        %351 = vmatpush1.bf16.msra.mxu0 0
        %352 = vmatprep.subr.bf16.mxu0 0
        %353 = vmatpush1.bf16.msra.mxu0 0
        %354 = vmatprep.subr.bf16.mxu0 0
        %355 = vmatpush1.bf16.msra.mxu0 0
        %356 = vmatprep.subr.bf16.mxu0 0
        %357 = vmatpush1.bf16.msra.mxu0 0
        %358 = vmatprep.subr.bf16.mxu0 0
        %359 = vmatpush1.bf16.msra.mxu0 0
        %360 = vmatprep.subr.bf16.mxu0 0
        %361 = vmatpush1.bf16.msra.mxu0 0
        %362 = vmatprep.subr.bf16.mxu0 0
        %363 = vmatpush1.bf16.msra.mxu0 0
        %364 = vmatprep.mubr.bf16.mxu0 0
        %365 = vmatmul.mubr.bf16.gmra.mrb[0].mxu0 %v330
        %v366 = vpop.f32.mrb[0].mxu0
        %v367 = vadd.f32 %v315, %v366
        %v368 = vpop.f32.mrb[0].mxu0
        %v369 = vpop.f32.mrb[0].mxu0
        %v370 = vpop.f32.mrb[0].mxu0
        %371 = vdwg.mxu0
        %v372 = vpack.c.bf16 %v367, %v367
        %vm373 = vcmask 781312
        %374 = vst.msk [vmem:[%s271] sm:$0xf] %vm373, %v372
        %s375 = sand.u32 %s157, 1
        %s376 = scalar_lea.sflag [#allocation4], %s375
        %s377 = sand.u32 %s157, 1
        %s378 = smul.addr %s377, 4
        %s379 = scalar_lea.vmem [#allocation7], %s378
        // Predicated region
        $region49: #{tpu_custom_call.1} parent=39 // pred_check
          %p380 = pneg %p167
        $region50: #{tpu_custom_call.1} parent=39 // pred_check_branch
          %382 = sbr.rel (%p380) target = $region52
        $region51: #{tpu_custom_call.1} parent=39 // pred_region
          %s384 = ssub.s32 64, 64
          %385 = vsyncadd %s376, %s384
          %s386 = sadd.s32 %s28, %s27
          %s387 = smul.addr %s386, 64
          %s388 = scalar_lea.hbm %s5, %s387
          %s390 = sshll.u32 %s379, 4
          %s391 = int_to_ptr.vmem [resolvable:$true] %s390
          %393 = dma.vmem_to_hbm [thread:$0]  %s391, 64, %s388, %s376
        $region52: #{tpu_custom_call.1} parent=39 // pred_fallthru
          _
      $region40: #{tpu_custom_call.1} parent=5 // pred_fallthru
        _
      %p394 = scmp.le.s32.totalorder 2, %s18
      // Predicated region
      $region53: #{tpu_custom_call.1} parent=5 // pred_check
        %p395 = pneg %p394
      $region54: #{tpu_custom_call.1} parent=5 // pred_check_branch
        %397 = sbr.rel (%p395) target = $region56
      $region55: #{tpu_custom_call.1} parent=5 // pred_region
        %s398 = ssub.s32 %s18, 2
        // Predicated region
        $region57: #{tpu_custom_call.1} parent=55 // pred_check
          %p399 = pneg %p173
        $region58: #{tpu_custom_call.1} parent=55 // pred_check_branch
          %401 = sbr.rel (%p399) target = $region60
        $region59: #{tpu_custom_call.1} parent=55 // pred_region
          %s402 = sand.u32 %s158, 1
          %s403 = scalar_lea.sflag [#allocation4], %s402
          %s404 = sand.u32 %s158, 1
          %s405 = smul.addr %s404, 4
          %s406 = scalar_lea.vmem [#allocation7], %s405
          %407 = dma.done %s403, 64
        $region60: #{tpu_custom_call.1} parent=55 // pred_fallthru
          _
      $region56: #{tpu_custom_call.1} parent=5 // pred_fallthru
        _
    $region6: #{tpu_custom_call.1} parent=1 // loop_footer
      %s22 = sadd.s32 1, %s18
    $region7: #{tpu_custom_call.1} parent=1 // loop_footer_branch
      %17 = sbr.rel target = $region3
    $region8: #{tpu_custom_call.1} parent=1 // loop_exit
      _
    %408 = vsyncpa [#allocation3], 1
    %s409 = scalar_lea.sflag [#allocation3], 1
    %410 = vsyncpa %s409, 1
    %411 = vsyncpa [#allocation6], 1
    %412 = vsyncpa [#allocation4], 1
    %s413 = scalar_lea.sflag [#allocation4], 1
    %414 = vsyncpa %s413, 1

</llo_original>
